<compile_context>
chip_gen: v5e
topology: v5e:2x2
jax: 0.10.0
libtpu: 0.0.40
codegen_flags: <defaults>
</compile_context>

<pallas_src>
from functools import partial

import numpy as np
import jax
import jax.numpy as jnp
from jax.experimental import pallas as pl
from jax.experimental.pallas import tpu as pltpu


def _round_up(x, m):
    return ((x + m - 1) // m) * m


# ----------------------------- Pallas kernel ------------------------------ #
def mome_kernel(x_ref,
                wf_ref, bf_ref, s0_ref, sh0_ref,
                w1_ref, b1_ref, s1_ref, sh1_ref,
                gsum_ref, rep_ref, wt1_ref, bt1_ref, st_ref, sht_ref,
                wt2_ref, bt2_ref,
                out_ref, *, num_experts, num_tasks):
    E, T = num_experts, num_tasks
    EH1 = s0_ref.shape[1]                    # E * H1 (packed expert width)
    EH2 = s1_ref.shape[1]                    # E * H2

    x = x_ref[...]                           # (TB, D_in) bf16

    # (1) fused expert layer-0 + ALL task gate logits in one lane-dense MXU pass.
    h0 = jnp.dot(x, wf_ref[...], preferred_element_type=jnp.float32) + bf_ref[...]
    e0 = jnp.maximum(h0[:, :EH1] * s0_ref[...] + sh0_ref[...], 0.0)       # (TB, E*H1)
    glog = h0[:, EH1:EH1 + T * E]            # (TB, T*E) gate logits (bias folded)

    # (2) expert layer-1: all experts as ONE block-diagonal matmul.
    e1 = jnp.dot(e0.astype(jnp.bfloat16), w1_ref[...],
                 preferred_element_type=jnp.float32) + b1_ref[...]
    e1 = jnp.maximum(e1 * s1_ref[...] + sh1_ref[...], 0.0)                # (TB, E*H2) f32

    # per-task softmax: subtract a single per-row max (same constant per row leaves
    # every group's softmax unchanged), one exp over the whole slice, group sums via
    # a tiny kron(I_T, ones(E,E)) matmul, reciprocal on the (otherwise idle) EUP.
    glog = glog - jnp.max(glog, axis=-1, keepdims=True)
    ex = jnp.exp(glog)                                                    # (TB, T*E)
    denom = jnp.dot(ex, gsum_ref[...], preferred_element_type=jnp.float32)
    gate = ex * pl.reciprocal(denom, approx=True)                         # (TB, T*E)

    # (3) mixture + tower layer-1 WITHOUT materializing [e1]*T: broadcast gates to
    # lanes with a constant kron matmul, then multiply each task's 128-lane slice by
    # e1 and accumulate through that task's rows of the block-diagonal wt1 (whose
    # E-tiling performs the expert group-sum and the tower Linear1 simultaneously).
    gate_rep = jnp.dot(gate.astype(jnp.bfloat16), rep_ref[...],
                       preferred_element_type=jnp.float32)                # (TB, T*E*H2)
    wt1 = wt1_ref[...]                                                    # (T*EH2, T*TH)
    th_acc = None
    for t in range(T):
        prod_t = (gate_rep[:, t * EH2:(t + 1) * EH2] * e1).astype(jnp.bfloat16)
        part = jnp.dot(prod_t, wt1[t * EH2:(t + 1) * EH2, :],
                       preferred_element_type=jnp.float32)
        th_acc = part if th_acc is None else th_acc + part
    th = th_acc + bt1_ref[...]
    th = jnp.maximum(th * st_ref[...] + sht_ref[...], 0.0)                # (TB, T*TH)

    # (4) tower layer-2 (block-diagonal over tasks) padded to 128 output lanes ->
    # a single unmasked lane-dense store.
    logits = jnp.dot(th.astype(jnp.bfloat16), wt2_ref[...],
                     preferred_element_type=jnp.float32) + bt2_ref[...]   # (TB, 128)
    out_ref[...] = 1.0 / (1.0 + jnp.exp(-logits))


# --------------------------- wrapper-side packing --------------------------- #
def pack_params(p):
    """Repack per-expert / per-task parameters into lane-dense fused matrices.

    MXU-feeding weights are cast to bf16 (f32 accumulation inside the kernel);
    biases and folded-BN scale/shift stay f32 for the epilogue.
    """
    E, D_in, H1 = p["w0"].shape
    H2 = p["w1"].shape[2]
    T = p["wg"].shape[0]
    TH = p["wt1"].shape[2]
    EH1, EH2 = E * H1, E * H2
    bf16, f32 = jnp.bfloat16, jnp.float32

    # fused layer-0 + gate weight, padded to a multiple of 128 lanes.
    fused_cols = EH1 + T * E
    P0 = _round_up(fused_cols, 128)
    wf = jnp.zeros((D_in, P0), f32)
    wf = wf.at[:, :EH1].set(jnp.transpose(p["w0"], (1, 0, 2)).reshape(D_in, EH1))
    wf = wf.at[:, EH1:fused_cols].set(jnp.transpose(p["wg"], (1, 0, 2)).reshape(D_in, T * E))
    bf = jnp.zeros((1, P0), f32)
    bf = bf.at[:, :EH1].set(jnp.transpose(p["b0"], (1, 0, 2)).reshape(1, EH1))
    bf = bf.at[:, EH1:fused_cols].set(jnp.transpose(p["bg"], (1, 0, 2)).reshape(1, T * E))

    # BN (shared across experts) tiled to packed width.
    s0p, sh0p = jnp.tile(p["s0"], (1, E)), jnp.tile(p["sh0"], (1, E))
    s1p, sh1p = jnp.tile(p["s1"], (1, E)), jnp.tile(p["sh1"], (1, E))

    # block-diagonal layer-1 weight.
    w1bd = jax.scipy.linalg.block_diag(*[p["w1"][e] for e in range(E)])          # (EH1, EH2)
    b1p = jnp.transpose(p["b1"], (1, 0, 2)).reshape(1, EH2)

    # softmax group-sum constant and gate -> lane expansion constant.
    gsum = jnp.asarray(np.kron(np.eye(T, dtype=np.float32),
                               np.ones((E, E), dtype=np.float32)))               # (T*E, T*E)
    rep = jnp.asarray(np.kron(np.eye(T * E, dtype=np.float32),
                              np.ones((1, H2), dtype=np.float32)))               # (T*E, T*E*H2)

    # tower layer-1: wt1[t] tiled over experts (group-sum), block-diag over tasks.
    wt1bd = jax.scipy.linalg.block_diag(*[jnp.tile(p["wt1"][t], (E, 1)) for t in range(T)])
    bt1p = p["bt1"].reshape(1, T * TH)
    stp = p["st"].reshape(1, T * TH)
    shtp = p["sht"].reshape(1, T * TH)

    # tower layer-2: block-diagonal over tasks, lane-padded to 128 for a dense store.
    NOUT = _round_up(max(T, 1), 128)
    wt2bd = jax.scipy.linalg.block_diag(*[p["wt2"][t] for t in range(T)])         # (T*TH, T)
    wt2p = jnp.zeros((T * TH, NOUT), f32).at[:, :T].set(wt2bd)
    bt2p = jnp.zeros((1, NOUT), f32).at[:, :T].set(p["bt2"].reshape(1, T))

    packed = (wf.astype(bf16), bf,
              s0p, sh0p,
              w1bd.astype(bf16), b1p, s1p, sh1p,
              gsum, rep.astype(bf16),
              wt1bd.astype(bf16), bt1p, stp, shtp,
              wt2p.astype(bf16), bt2p)
    return packed, NOUT


# ------------------------------ JAX wrapper -------------------------------- #
def mome_forward(x, params):
    B, D_in = x.shape
    E = params["w0"].shape[0]
    T = params["wg"].shape[0]
    H1 = params["w0"].shape[2]
    H2 = params["w1"].shape[2]
    TH = params["wt1"].shape[2]
    packed, NOUT = pack_params(params)
    P0 = packed[0].shape[1]

    # Batch tile sized from VMEM instead of a small fixed cap: live per-row
    # intermediates are only a few KB of f32, so TB=2048 is ~12 MB — safely inside a
    # 48 MiB limit even on v7x's 64 MiB physical VMEM (v5e/v6e have 128 MiB).  When
    # the batch is big enough, split into >=2 tiles so the "parallel" grid axis can
    # feed both v7x TensorCores.
    ROW = 16                               # bf16 sublane-packing friendly row alignment
    TB_CAP = 2048
    TB = min(_round_up(B, ROW), TB_CAP)
    if B <= TB and B >= 2 * ROW:
        TB = _round_up((B + 1) // 2, ROW)  # >= 2 grid steps -> both v7x TCs get work
    B_pad = _round_up(B, TB)

    x = x.astype(jnp.bfloat16)
    if B_pad != B:
        x = jnp.pad(x, ((0, B_pad - B), (0, 0)))
    grid = (B_pad // TB,)

    def resident(a):
        nd = a.ndim
        return pl.BlockSpec(a.shape, lambda i: (0,) * nd)   # weights stay VMEM-resident

    in_specs = ([pl.BlockSpec((TB, D_in), lambda i: (i, 0))]
                + [resident(a) for a in packed])
    out_specs = pl.BlockSpec((TB, NOUT), lambda i: (i, 0))

    # Advisory cost estimate so XLA schedules the surrounding embedding gather /
    # concat / output slicing around the custom call instead of serializing on it.
    flops = 2 * B_pad * (D_in * P0 + (E * H1) * (E * H2) + (T * E) ** 2
                         + (T * E) * (T * E * H2) + T * (E * H2) * (T * TH)
                         + (T * TH) * NOUT)
    transcendentals = B_pad * (2 * T * E + NOUT)
    weight_bytes = sum(int(np.prod(a.shape)) * a.dtype.itemsize for a in packed)
    bytes_accessed = B_pad * D_in * 2 + B_pad * NOUT * 4 + weight_bytes

    out = pl.pallas_call(
        partial(mome_kernel, num_experts=E, num_tasks=T),
        out_shape=jax.ShapeDtypeStruct((B_pad, NOUT), jnp.float32),
        grid=grid,
        in_specs=in_specs,
        out_specs=out_specs,
        compiler_params=pltpu.CompilerParams(
            dimension_semantics=("parallel",),
            vmem_limit_bytes=48 * 1024 * 1024),   # headroom below v7x's 64 MiB physical
        cost_estimate=pl.CostEstimate(flops=flops,
                                      transcendentals=transcendentals,
                                      bytes_accessed=bytes_accessed),
    )(x, *packed)

    out = out[:B, :T]
    # PyTorch returns a list of (B,) tensors, one per task.
    return [out[:, t] for t in range(T)]


def embed_and_concat(cat_x, num_x, emb_table, offsets):
    """EmbeddingLayer + view + concat (gather glue, done in plain JAX)."""
    idx = cat_x + offsets[None, :]
    emb = emb_table[idx]                                   # (B, F, embed_dim)
    emb = emb.reshape(cat_x.shape[0], -1)                  # (B, F*embed_dim)
    return jnp.concatenate([emb, num_x], axis=1).astype(jnp.float32)


# ---------------------------- pure-JAX reference --------------------------- #
def ref_forward(x, p):
    E = p["w0"].shape[0]
    T = p["wg"].shape[0]
    experts = []
    for e in range(E):
        h = x @ p["w0"][e] + p["b0"][e]
        h = jnp.maximum(h * p["s0"] + p["sh0"], 0.0)
        h = h @ p["w1"][e] + p["b1"][e]
        h = jnp.maximum(h * p["s1"] + p["sh1"], 0.0)
        experts.append(h)
    eo = jnp.stack(experts, axis=1)                        # (B, E, H2)
    res = []
    for t in range(T):
        g = jax.nn.softmax(x @ p["wg"][t] + p["bg"][t], axis=-1)
        fea = jnp.einsum("be,beh->bh", g, eo)
        th = jnp.maximum((fea @ p["wt1"][t] + p["bt1"][t]) * p["st"][t] + p["sht"][t], 0.0)
        logit = th @ p["wt2"][t] + p["bt2"][t]
        res.append(jax.nn.sigmoid(logit[:, 0]))
    return res


# --------------------------------- main ------------------------------------ #
if __name__ == "__main__":
    # Small config consistent with MoME.__init__ (embed=True, if_tower=True, epoch >= M).
    B = 8
    categorical_field_dims = [3, 4, 5]          # 3 categorical fields
    embed_dim = 4
    numerical_num = 4
    expert_layer_dims = [32, 32]                # two MoME layers
    num_experts = 4
    num_tasks = 2
    num_classes = 1
    tower_hidden = 16
    D_in = len(categorical_field_dims) * embed_dim + numerical_num   # 16
    H1, H2 = expert_layer_dims
    eps = 1e-5

    key = jax.random.PRNGKey(0)
    ks = iter(jax.random.split(key, 32))

    def u(shape, scale=0.2):
        return jax.random.uniform(next(ks), shape, jnp.float32, -scale, scale)

    # Embedding table (xavier-uniform-ish) + offsets
    n_emb = sum(categorical_field_dims)
    bound = float(np.sqrt(6.0 / (n_emb + embed_dim)))
    emb_table = jax.random.uniform(next(ks), (n_emb, embed_dim), jnp.float32, -bound, bound)
    offsets = jnp.asarray(np.array((0, *np.cumsum(categorical_field_dims)[:-1]), dtype=np.int32))

    def bn_fold(dim):
        """Fold eval-mode BatchNorm1d into (scale, shift)."""
        gamma = 1.0 + u((1, dim), 0.1)
        beta = u((1, dim), 0.1)
        mean = u((1, dim), 0.1)
        var = 1.0 + jnp.abs(u((1, dim), 0.1))
        scale = gamma / jnp.sqrt(var + eps)
        shift = beta - mean * scale
        return scale, shift

    s0, sh0 = bn_fold(H1)
    s1, sh1 = bn_fold(H2)
    st_list, sht_list = [], []
    for _ in range(num_tasks):
        s, sh = bn_fold(tower_hidden)
        st_list.append(s)
        sht_list.append(sh)

    params = dict(
        w0=u((num_experts, D_in, H1)),  b0=u((num_experts, 1, H1)),
        s0=s0, sh0=sh0,
        w1=u((num_experts, H1, H2)),    b1=u((num_experts, 1, H2)),
        s1=s1, sh1=sh1,
        wg=u((num_tasks, D_in, num_experts)), bg=u((num_tasks, 1, num_experts)),
        wt1=u((num_tasks, H2, tower_hidden)), bt1=u((num_tasks, 1, tower_hidden)),
        st=jnp.stack(st_list, axis=0),        sht=jnp.stack(sht_list, axis=0),
        wt2=u((num_tasks, tower_hidden, num_classes)), bt2=u((num_tasks, 1, num_classes)),
    )

    # Inputs: categorical ids per field + numerical features.
    cat_cols = []
    for f, fd in enumerate(categorical_field_dims):
        cat_cols.append(jax.random.randint(next(ks), (B, 1), 0, fd, dtype=jnp.int32))
    categorical_x = jnp.concatenate(cat_cols, axis=1)          # (B, 3) int32
    numerical_x = u((B, numerical_num), 1.0)                   # (B, 4) f32

    x = embed_and_concat(categorical_x, numerical_x, emb_table, offsets)   # (B, 16)

    results = mome_forward(x, params)
    results = [jax.block_until_ready(r) for r in results]

    ref = ref_forward(x, params)
    # bf16 matmul inputs + approx reciprocal -> loosened tolerances vs the f32 reference.
    for r, rr in zip(results, ref):
        np.testing.assert_allclose(np.asarray(r), np.asarray(rr), rtol=2e-2, atol=5e-3)

    print("KERNEL_OK")
</pallas_src>

<mosaic_0001>
module attributes {stable_mosaic.version = 11 : i64} {
  func.func @mome_kernel(%arg0: i32, %arg1: memref<16x16xbf16, #tpu.memory_space<vmem>>, %arg2: memref<16x256xbf16, #tpu.memory_space<vmem>>, %arg3: memref<1x256xf32, #tpu.memory_space<vmem>>, %arg4: memref<1x128xf32, #tpu.memory_space<vmem>>, %arg5: memref<1x128xf32, #tpu.memory_space<vmem>>, %arg6: memref<128x128xbf16, #tpu.memory_space<vmem>>, %arg7: memref<1x128xf32, #tpu.memory_space<vmem>>, %arg8: memref<1x128xf32, #tpu.memory_space<vmem>>, %arg9: memref<1x128xf32, #tpu.memory_space<vmem>>, %arg10: memref<8x8xf32, #tpu.memory_space<vmem>>, %arg11: memref<8x256xbf16, #tpu.memory_space<vmem>>, %arg12: memref<256x32xbf16, #tpu.memory_space<vmem>>, %arg13: memref<1x32xf32, #tpu.memory_space<vmem>>, %arg14: memref<1x32xf32, #tpu.memory_space<vmem>>, %arg15: memref<1x32xf32, #tpu.memory_space<vmem>>, %arg16: memref<32x128xbf16, #tpu.memory_space<vmem>>, %arg17: memref<1x128xf32, #tpu.memory_space<vmem>>, %arg18: memref<16x128xf32, #tpu.memory_space<vmem>>) attributes {dimension_semantics = [#tpu.dimension_semantics<parallel>], iteration_bounds = array<i64: 1>, scalar_prefetch = 0 : i64, scratch_operands = 0 : i64, tpu.core_type = #tpu.core_type<tc>, window_params = [{transform_indices = @transform_0, window_bounds = array<i64: 16, 16>}, {pipeline_mode = #tpu.pipeline_mode<synchronous>, transform_indices = @transform_1, window_bounds = array<i64: 16, 256>}, {pipeline_mode = #tpu.pipeline_mode<synchronous>, transform_indices = @transform_2, window_bounds = array<i64: 1, 256>}, {pipeline_mode = #tpu.pipeline_mode<synchronous>, transform_indices = @transform_3, window_bounds = array<i64: 1, 128>}, {pipeline_mode = #tpu.pipeline_mode<synchronous>, transform_indices = @transform_4, window_bounds = array<i64: 1, 128>}, {pipeline_mode = #tpu.pipeline_mode<synchronous>, transform_indices = @transform_5, window_bounds = array<i64: 128, 128>}, {pipeline_mode = #tpu.pipeline_mode<synchronous>, transform_indices = @transform_6, window_bounds = array<i64: 1, 128>}, {pipeline_mode = #tpu.pipeline_mode<synchronous>, transform_indices = @transform_7, window_bounds = array<i64: 1, 128>}, {pipeline_mode = #tpu.pipeline_mode<synchronous>, transform_indices = @transform_8, window_bounds = array<i64: 1, 128>}, {pipeline_mode = #tpu.pipeline_mode<synchronous>, transform_indices = @transform_9, window_bounds = array<i64: 8, 8>}, {pipeline_mode = #tpu.pipeline_mode<synchronous>, transform_indices = @transform_10, window_bounds = array<i64: 8, 256>}, {pipeline_mode = #tpu.pipeline_mode<synchronous>, transform_indices = @transform_11, window_bounds = array<i64: 256, 32>}, {pipeline_mode = #tpu.pipeline_mode<synchronous>, transform_indices = @transform_12, window_bounds = array<i64: 1, 32>}, {pipeline_mode = #tpu.pipeline_mode<synchronous>, transform_indices = @transform_13, window_bounds = array<i64: 1, 32>}, {pipeline_mode = #tpu.pipeline_mode<synchronous>, transform_indices = @transform_14, window_bounds = array<i64: 1, 32>}, {pipeline_mode = #tpu.pipeline_mode<synchronous>, transform_indices = @transform_15, window_bounds = array<i64: 32, 128>}, {pipeline_mode = #tpu.pipeline_mode<synchronous>, transform_indices = @transform_16, window_bounds = array<i64: 1, 128>}, {transform_indices = @transform_17, window_bounds = array<i64: 16, 128>}]} {
    %c0 = arith.constant 0 : index
    %c0_0 = arith.constant 0 : index
    %0 = vector.load %arg1[%c0, %c0_0] : memref<16x16xbf16, #tpu.memory_space<vmem>>, vector<16x16xbf16>
    %c0_1 = arith.constant 0 : index
    %c0_2 = arith.constant 0 : index
    %1 = vector.load %arg2[%c0_1, %c0_2] : memref<16x256xbf16, #tpu.memory_space<vmem>>, vector<16x256xbf16>
    %cst = arith.constant dense<0.000000e+00> : vector<16x256xf32>
    %2 = tpu.matmul %0, %1, %cst {dimension_numbers = #tpu.dot_dimension_numbers<[1], [0], [0], [1], [0, 0, 1, 1], [], []>} : vector<16x16xbf16>, vector<16x256xbf16>, vector<16x256xf32> -> vector<16x256xf32>
    %c0_3 = arith.constant 0 : index
    %c0_4 = arith.constant 0 : index
    %3 = vector.load %arg3[%c0_3, %c0_4] : memref<1x256xf32, #tpu.memory_space<vmem>>, vector<1x256xf32>
    %4 = vector.broadcast %3 : vector<1x256xf32> to vector<16x256xf32>
    %5 = arith.addf %2, %4 : vector<16x256xf32>
    %6 = vector.extract_strided_slice %5 {offsets = [0, 0], sizes = [16, 128], strides = [1, 1]} : vector<16x256xf32> to vector<16x128xf32>
    %c0_5 = arith.constant 0 : index
    %c0_6 = arith.constant 0 : index
    %7 = vector.load %arg4[%c0_5, %c0_6] : memref<1x128xf32, #tpu.memory_space<vmem>>, vector<1x128xf32>
    %8 = vector.broadcast %7 : vector<1x128xf32> to vector<16x128xf32>
    %9 = arith.mulf %6, %8 : vector<16x128xf32>
    %c0_7 = arith.constant 0 : index
    %c0_8 = arith.constant 0 : index
    %10 = vector.load %arg5[%c0_7, %c0_8] : memref<1x128xf32, #tpu.memory_space<vmem>>, vector<1x128xf32>
    %11 = vector.broadcast %10 : vector<1x128xf32> to vector<16x128xf32>
    %12 = arith.addf %9, %11 : vector<16x128xf32>
    %cst_9 = arith.constant 0.000000e+00 : f32
    %13 = vector.broadcast %cst_9 : f32 to vector<16x128xf32>
    %14 = arith.maximumf %12, %13 : vector<16x128xf32>
    %15 = vector.extract_strided_slice %5 {offsets = [0, 128], sizes = [16, 8], strides = [1, 1]} : vector<16x256xf32> to vector<16x8xf32>
    %16 = arith.truncf %14 : vector<16x128xf32> to vector<16x128xbf16>
    %c0_10 = arith.constant 0 : index
    %c0_11 = arith.constant 0 : index
    %17 = vector.load %arg6[%c0_10, %c0_11] : memref<128x128xbf16, #tpu.memory_space<vmem>>, vector<128x128xbf16>
    %cst_12 = arith.constant dense<0.000000e+00> : vector<16x128xf32>
    %18 = tpu.matmul %16, %17, %cst_12 {dimension_numbers = #tpu.dot_dimension_numbers<[1], [0], [0], [1], [0, 0, 1, 1], [], []>} : vector<16x128xbf16>, vector<128x128xbf16>, vector<16x128xf32> -> vector<16x128xf32>
    %c0_13 = arith.constant 0 : index
    %c0_14 = arith.constant 0 : index
    %19 = vector.load %arg7[%c0_13, %c0_14] : memref<1x128xf32, #tpu.memory_space<vmem>>, vector<1x128xf32>
    %20 = vector.broadcast %19 : vector<1x128xf32> to vector<16x128xf32>
    %21 = arith.addf %18, %20 : vector<16x128xf32>
    %c0_15 = arith.constant 0 : index
    %c0_16 = arith.constant 0 : index
    %22 = vector.load %arg8[%c0_15, %c0_16] : memref<1x128xf32, #tpu.memory_space<vmem>>, vector<1x128xf32>
    %23 = vector.broadcast %22 : vector<1x128xf32> to vector<16x128xf32>
    %24 = arith.mulf %21, %23 : vector<16x128xf32>
    %c0_17 = arith.constant 0 : index
    %c0_18 = arith.constant 0 : index
    %25 = vector.load %arg9[%c0_17, %c0_18] : memref<1x128xf32, #tpu.memory_space<vmem>>, vector<1x128xf32>
    %26 = vector.broadcast %25 : vector<1x128xf32> to vector<16x128xf32>
    %27 = arith.addf %24, %26 : vector<16x128xf32>
    %cst_19 = arith.constant 0.000000e+00 : f32
    %28 = vector.broadcast %cst_19 : f32 to vector<16x128xf32>
    %29 = arith.maximumf %27, %28 : vector<16x128xf32>
    %cst_20 = arith.constant dense<0xFF800000> : vector<16xf32>
    %30 = vector.multi_reduction <maximumf>, %15, %cst_20 [1] : vector<16x8xf32> to vector<16xf32>
    %31 = vector.shape_cast %30 : vector<16xf32> to vector<16x1xf32>
    %32 = vector.broadcast %31 : vector<16x1xf32> to vector<16x8xf32>
    %33 = arith.subf %15, %32 : vector<16x8xf32>
    %34 = math.exp %33 : vector<16x8xf32>
    %c0_21 = arith.constant 0 : index
    %c0_22 = arith.constant 0 : index
    %35 = vector.load %arg10[%c0_21, %c0_22] : memref<8x8xf32, #tpu.memory_space<vmem>>, vector<8x8xf32>
    %cst_23 = arith.constant dense<0.000000e+00> : vector<16x8xf32>
    %36 = tpu.matmul %34, %35, %cst_23 {dimension_numbers = #tpu.dot_dimension_numbers<[1], [0], [0], [1], [0, 0, 1, 1], [], []>} : vector<16x8xf32>, vector<8x8xf32>, vector<16x8xf32> -> vector<16x8xf32>
    %37 = tpu.reciprocal %36 {approx = true} : vector<16x8xf32> -> vector<16x8xf32>
    %38 = arith.mulf %34, %37 : vector<16x8xf32>
    %39 = arith.truncf %38 : vector<16x8xf32> to vector<16x8xbf16>
    %c0_24 = arith.constant 0 : index
    %c0_25 = arith.constant 0 : index
    %40 = vector.load %arg11[%c0_24, %c0_25] : memref<8x256xbf16, #tpu.memory_space<vmem>>, vector<8x256xbf16>
    %cst_26 = arith.constant dense<0.000000e+00> : vector<16x256xf32>
    %41 = tpu.matmul %39, %40, %cst_26 {dimension_numbers = #tpu.dot_dimension_numbers<[1], [0], [0], [1], [0, 0, 1, 1], [], []>} : vector<16x8xbf16>, vector<8x256xbf16>, vector<16x256xf32> -> vector<16x256xf32>
    %c0_27 = arith.constant 0 : index
    %c0_28 = arith.constant 0 : index
    %42 = vector.load %arg12[%c0_27, %c0_28] : memref<256x32xbf16, #tpu.memory_space<vmem>>, vector<256x32xbf16>
    %43 = vector.extract_strided_slice %41 {offsets = [0, 0], sizes = [16, 128], strides = [1, 1]} : vector<16x256xf32> to vector<16x128xf32>
    %44 = arith.mulf %43, %29 : vector<16x128xf32>
    %45 = arith.truncf %44 : vector<16x128xf32> to vector<16x128xbf16>
    %46 = vector.extract_strided_slice %42 {offsets = [0, 0], sizes = [128, 32], strides = [1, 1]} : vector<256x32xbf16> to vector<128x32xbf16>
    %cst_29 = arith.constant dense<0.000000e+00> : vector<16x32xf32>
    %47 = tpu.matmul %45, %46, %cst_29 {dimension_numbers = #tpu.dot_dimension_numbers<[1], [0], [0], [1], [0, 0, 1, 1], [], []>} : vector<16x128xbf16>, vector<128x32xbf16>, vector<16x32xf32> -> vector<16x32xf32>
    %48 = vector.extract_strided_slice %41 {offsets = [0, 128], sizes = [16, 128], strides = [1, 1]} : vector<16x256xf32> to vector<16x128xf32>
    %49 = arith.mulf %48, %29 : vector<16x128xf32>
    %50 = arith.truncf %49 : vector<16x128xf32> to vector<16x128xbf16>
    %51 = vector.extract_strided_slice %42 {offsets = [128, 0], sizes = [128, 32], strides = [1, 1]} : vector<256x32xbf16> to vector<128x32xbf16>
    %cst_30 = arith.constant dense<0.000000e+00> : vector<16x32xf32>
    %52 = tpu.matmul %50, %51, %cst_30 {dimension_numbers = #tpu.dot_dimension_numbers<[1], [0], [0], [1], [0, 0, 1, 1], [], []>} : vector<16x128xbf16>, vector<128x32xbf16>, vector<16x32xf32> -> vector<16x32xf32>
    %53 = arith.addf %47, %52 : vector<16x32xf32>
    %c0_31 = arith.constant 0 : index
    %c0_32 = arith.constant 0 : index
    %54 = vector.load %arg13[%c0_31, %c0_32] : memref<1x32xf32, #tpu.memory_space<vmem>>, vector<1x32xf32>
    %55 = vector.broadcast %54 : vector<1x32xf32> to vector<16x32xf32>
    %56 = arith.addf %53, %55 : vector<16x32xf32>
    %c0_33 = arith.constant 0 : index
    %c0_34 = arith.constant 0 : index
    %57 = vector.load %arg14[%c0_33, %c0_34] : memref<1x32xf32, #tpu.memory_space<vmem>>, vector<1x32xf32>
    %58 = vector.broadcast %57 : vector<1x32xf32> to vector<16x32xf32>
    %59 = arith.mulf %56, %58 : vector<16x32xf32>
    %c0_35 = arith.constant 0 : index
    %c0_36 = arith.constant 0 : index
    %60 = vector.load %arg15[%c0_35, %c0_36] : memref<1x32xf32, #tpu.memory_space<vmem>>, vector<1x32xf32>
    %61 = vector.broadcast %60 : vector<1x32xf32> to vector<16x32xf32>
    %62 = arith.addf %59, %61 : vector<16x32xf32>
    %cst_37 = arith.constant 0.000000e+00 : f32
    %63 = vector.broadcast %cst_37 : f32 to vector<16x32xf32>
    %64 = arith.maximumf %62, %63 : vector<16x32xf32>
    %65 = arith.truncf %64 : vector<16x32xf32> to vector<16x32xbf16>
    %c0_38 = arith.constant 0 : index
    %c0_39 = arith.constant 0 : index
    %66 = vector.load %arg16[%c0_38, %c0_39] : memref<32x128xbf16, #tpu.memory_space<vmem>>, vector<32x128xbf16>
    %cst_40 = arith.constant dense<0.000000e+00> : vector<16x128xf32>
    %67 = tpu.matmul %65, %66, %cst_40 {dimension_numbers = #tpu.dot_dimension_numbers<[1], [0], [0], [1], [0, 0, 1, 1], [], []>} : vector<16x32xbf16>, vector<32x128xbf16>, vector<16x128xf32> -> vector<16x128xf32>
    %c0_41 = arith.constant 0 : index
    %c0_42 = arith.constant 0 : index
    %68 = vector.load %arg17[%c0_41, %c0_42] : memref<1x128xf32, #tpu.memory_space<vmem>>, vector<1x128xf32>
    %69 = vector.broadcast %68 : vector<1x128xf32> to vector<16x128xf32>
    %70 = arith.addf %67, %69 : vector<16x128xf32>
    %cst_43 = arith.constant 0.000000e+00 : f32
    %71 = vector.broadcast %cst_43 : f32 to vector<16x128xf32>
    %72 = arith.subf %71, %70 : vector<16x128xf32>
    %73 = math.exp %72 : vector<16x128xf32>
    %cst_44 = arith.constant 1.000000e+00 : f32
    %74 = vector.broadcast %cst_44 : f32 to vector<16x128xf32>
    %75 = arith.addf %74, %73 : vector<16x128xf32>
    %cst_45 = arith.constant 1.000000e+00 : f32
    %76 = vector.broadcast %cst_45 : f32 to vector<16x128xf32>
    %77 = arith.divf %76, %75 : vector<16x128xf32>
    %c0_46 = arith.constant 0 : index
    %c0_47 = arith.constant 0 : index
    %78 = vector.load %arg18[%c0_46, %c0_47] : memref<16x128xf32, #tpu.memory_space<vmem>>, vector<16x128xf32>
    tpu.vector_store %arg18[%c0_46, %c0_47], %77 {strides = array<i32>} : memref<16x128xf32, #tpu.memory_space<vmem>>, vector<16x128xf32>,
    return
  }
  func.func @transform_0(%arg0: i32) -> (i32, i32) {
    %c0_i32 = arith.constant 0 : i32
    %c0_i32_0 = arith.constant 0 : i32
    return %arg0, %c0_i32 : i32, i32
  }
  func.func @transform_1(%arg0: i32) -> (i32, i32) {
    %c0_i32 = arith.constant 0 : i32
    %c0_i32_0 = arith.constant 0 : i32
    %c0_i32_1 = arith.constant 0 : i32
    return %c0_i32, %c0_i32_0 : i32, i32
  }
  func.func @transform_2(%arg0: i32) -> (i32, i32) {
    %c0_i32 = arith.constant 0 : i32
    %c0_i32_0 = arith.constant 0 : i32
    %c0_i32_1 = arith.constant 0 : i32
    return %c0_i32, %c0_i32_0 : i32, i32
  }
  func.func @transform_3(%arg0: i32) -> (i32, i32) {
    %c0_i32 = arith.constant 0 : i32
    %c0_i32_0 = arith.constant 0 : i32
    %c0_i32_1 = arith.constant 0 : i32
    return %c0_i32, %c0_i32_0 : i32, i32
  }
  func.func @transform_4(%arg0: i32) -> (i32, i32) {
    %c0_i32 = arith.constant 0 : i32
    %c0_i32_0 = arith.constant 0 : i32
    %c0_i32_1 = arith.constant 0 : i32
    return %c0_i32, %c0_i32_0 : i32, i32
  }
  func.func @transform_5(%arg0: i32) -> (i32, i32) {
    %c0_i32 = arith.constant 0 : i32
    %c0_i32_0 = arith.constant 0 : i32
    %c0_i32_1 = arith.constant 0 : i32
    return %c0_i32, %c0_i32_0 : i32, i32
  }
  func.func @transform_6(%arg0: i32) -> (i32, i32) {
    %c0_i32 = arith.constant 0 : i32
    %c0_i32_0 = arith.constant 0 : i32
    %c0_i32_1 = arith.constant 0 : i32
    return %c0_i32, %c0_i32_0 : i32, i32
  }
  func.func @transform_7(%arg0: i32) -> (i32, i32) {
    %c0_i32 = arith.constant 0 : i32
    %c0_i32_0 = arith.constant 0 : i32
    %c0_i32_1 = arith.constant 0 : i32
    return %c0_i32, %c0_i32_0 : i32, i32
  }
  func.func @transform_8(%arg0: i32) -> (i32, i32) {
    %c0_i32 = arith.constant 0 : i32
    %c0_i32_0 = arith.constant 0 : i32
    %c0_i32_1 = arith.constant 0 : i32
    return %c0_i32, %c0_i32_0 : i32, i32
  }
  func.func @transform_9(%arg0: i32) -> (i32, i32) {
    %c0_i32 = arith.constant 0 : i32
    %c0_i32_0 = arith.constant 0 : i32
    %c0_i32_1 = arith.constant 0 : i32
    return %c0_i32, %c0_i32_0 : i32, i32
  }
  func.func @transform_10(%arg0: i32) -> (i32, i32) {
    %c0_i32 = arith.constant 0 : i32
    %c0_i32_0 = arith.constant 0 : i32
    %c0_i32_1 = arith.constant 0 : i32
    return %c0_i32, %c0_i32_0 : i32, i32
  }
  func.func @transform_11(%arg0: i32) -> (i32, i32) {
    %c0_i32 = arith.constant 0 : i32
    %c0_i32_0 = arith.constant 0 : i32
    %c0_i32_1 = arith.constant 0 : i32
    return %c0_i32, %c0_i32_0 : i32, i32
  }
  func.func @transform_12(%arg0: i32) -> (i32, i32) {
    %c0_i32 = arith.constant 0 : i32
    %c0_i32_0 = arith.constant 0 : i32
    %c0_i32_1 = arith.constant 0 : i32
    return %c0_i32, %c0_i32_0 : i32, i32
  }
  func.func @transform_13(%arg0: i32) -> (i32, i32) {
    %c0_i32 = arith.constant 0 : i32
    %c0_i32_0 = arith.constant 0 : i32
    %c0_i32_1 = arith.constant 0 : i32
    return %c0_i32, %c0_i32_0 : i32, i32
  }
  func.func @transform_14(%arg0: i32) -> (i32, i32) {
    %c0_i32 = arith.constant 0 : i32
    %c0_i32_0 = arith.constant 0 : i32
    %c0_i32_1 = arith.constant 0 : i32
    return %c0_i32, %c0_i32_0 : i32, i32
  }
  func.func @transform_15(%arg0: i32) -> (i32, i32) {
    %c0_i32 = arith.constant 0 : i32
    %c0_i32_0 = arith.constant 0 : i32
    %c0_i32_1 = arith.constant 0 : i32
    return %c0_i32, %c0_i32_0 : i32, i32
  }
  func.func @transform_16(%arg0: i32) -> (i32, i32) {
    %c0_i32 = arith.constant 0 : i32
    %c0_i32_0 = arith.constant 0 : i32
    %c0_i32_1 = arith.constant 0 : i32
    return %c0_i32, %c0_i32_0 : i32, i32
  }
  func.func @transform_17(%arg0: i32) -> (i32, i32) {
    %c0_i32 = arith.constant 0 : i32
    %c0_i32_0 = arith.constant 0 : i32
    return %arg0, %c0_i32 : i32, i32
  }
}

</mosaic_0001>

<llo_original>
// kernel: tpu_custom_call.1
$region0: #{tpu_custom_call.1}
  #allocation0 [shape = 'u32[]', space=smem, size = 0x4, offset = 0x4, fixed_abs, tag = 'smem constant byte address 0x4 - core index']
  #allocation1 [shape = 'u32[72,128]{1,0:T(1,128)}', space=vmem, size = 0x9000, scoped, tag = 'internal scratch']
  %s0 = inlined_call_operand.vmem [shape: bf16[16,16], index: 0, kind: input, shape index: {}]
  %s1 = inlined_call_operand.vmem [shape: bf16[16,256], index: 1, kind: input, shape index: {}]
  %s2 = inlined_call_operand.vmem [shape: f32[1,256], index: 2, kind: input, shape index: {}]
  %s3 = inlined_call_operand.vmem [shape: f32[1,128], index: 3, kind: input, shape index: {}]
  %s4 = inlined_call_operand.vmem [shape: f32[1,128], index: 4, kind: input, shape index: {}]
  %s5 = inlined_call_operand.vmem [shape: bf16[128,128], index: 5, kind: input, shape index: {}]
  %s6 = inlined_call_operand.vmem [shape: f32[1,128], index: 6, kind: input, shape index: {}]
  %s7 = inlined_call_operand.vmem [shape: f32[1,128], index: 7, kind: input, shape index: {}]
  %s8 = inlined_call_operand.vmem [shape: f32[1,128], index: 8, kind: input, shape index: {}]
  %s9 = inlined_call_operand.vmem [shape: f32[8,8], index: 9, kind: input, shape index: {}]
  %s10 = inlined_call_operand.vmem [shape: bf16[8,256], index: 10, kind: input, shape index: {}]
  %s11 = inlined_call_operand.vmem [shape: bf16[256,32], index: 11, kind: input, shape index: {}]
  %s12 = inlined_call_operand.vmem [shape: f32[1,32], index: 12, kind: input, shape index: {}]
  %s13 = inlined_call_operand.vmem [shape: f32[1,32], index: 13, kind: input, shape index: {}]
  %s14 = inlined_call_operand.vmem [shape: f32[1,32], index: 14, kind: input, shape index: {}]
  %s15 = inlined_call_operand.vmem [shape: bf16[32,128], index: 15, kind: input, shape index: {}]
  %s16 = inlined_call_operand.vmem [shape: f32[1,128], index: 16, kind: input, shape index: {}]
  %s17 = inlined_call_operand.hbm [shape: f32[16,128], index: 17, kind: output, shape index: {}]
  %s18 = sld [smem:[#allocation0]]
  $region78: #{tpu_custom_call.1} parent=0
    _
  %s20 = ssub.s32 1, %s18
  %s21 = scalar_select 0, %s20, %s18
  $region1: #{tpu_custom_call.1} parent=0
    #allocation2 [shape = 'u8[8192]{0}', space=vmem, size = 0x2000, scoped, tag = 'output window, operand 0, single buffered']
    #allocation3 [shape = 's32[1]{0}', space=sflag, size = 0x4, scoped, tag = 'scoped memory for tpu_custom_call.1']
    %22 = vsyncpa [#allocation3], 0
    // Predicated region
    $region2: #{tpu_custom_call.1} parent=1 // pred_check
      _
    $region3: #{tpu_custom_call.1} parent=1 // pred_check_branch
      %24 = sbr.rel (0) target = $region5
    $region4: #{tpu_custom_call.1} parent=1 // pred_region
      _
    $region5: #{tpu_custom_call.1} parent=1 // pred_fallthru
      _
    // Predicated region
    $region6: #{tpu_custom_call.1} parent=1 // pred_check
      _
    $region7: #{tpu_custom_call.1} parent=1 // pred_check_branch
      %26 = sbr.rel (0) target = $region9
    $region8: #{tpu_custom_call.1} parent=1 // pred_region
      _
    $region9: #{tpu_custom_call.1} parent=1 // pred_fallthru
      _
    // Predicated region
    $region10: #{tpu_custom_call.1} parent=1 // pred_check
      _
    $region11: #{tpu_custom_call.1} parent=1 // pred_check_branch
      %28 = sbr.rel (0) target = $region13
    $region12: #{tpu_custom_call.1} parent=1 // pred_region
      _
    $region13: #{tpu_custom_call.1} parent=1 // pred_fallthru
      _
    // Predicated region
    $region14: #{tpu_custom_call.1} parent=1 // pred_check
      _
    $region15: #{tpu_custom_call.1} parent=1 // pred_check_branch
      %30 = sbr.rel (0) target = $region17
    $region16: #{tpu_custom_call.1} parent=1 // pred_region
      _
    $region17: #{tpu_custom_call.1} parent=1 // pred_fallthru
      _
    // Predicated region
    $region18: #{tpu_custom_call.1} parent=1 // pred_check
      _
    $region19: #{tpu_custom_call.1} parent=1 // pred_check_branch
      %32 = sbr.rel (0) target = $region21
    $region20: #{tpu_custom_call.1} parent=1 // pred_region
      _
    $region21: #{tpu_custom_call.1} parent=1 // pred_fallthru
      _
    // Predicated region
    $region22: #{tpu_custom_call.1} parent=1 // pred_check
      _
    $region23: #{tpu_custom_call.1} parent=1 // pred_check_branch
      %34 = sbr.rel (0) target = $region25
    $region24: #{tpu_custom_call.1} parent=1 // pred_region
      _
    $region25: #{tpu_custom_call.1} parent=1 // pred_fallthru
      _
    // Predicated region
    $region26: #{tpu_custom_call.1} parent=1 // pred_check
      _
    $region27: #{tpu_custom_call.1} parent=1 // pred_check_branch
      %36 = sbr.rel (0) target = $region29
    $region28: #{tpu_custom_call.1} parent=1 // pred_region
      _
    $region29: #{tpu_custom_call.1} parent=1 // pred_fallthru
      _
    // Predicated region
    $region30: #{tpu_custom_call.1} parent=1 // pred_check
      _
    $region31: #{tpu_custom_call.1} parent=1 // pred_check_branch
      %38 = sbr.rel (0) target = $region33
    $region32: #{tpu_custom_call.1} parent=1 // pred_region
      _
    $region33: #{tpu_custom_call.1} parent=1 // pred_fallthru
      _
    // Predicated region
    $region34: #{tpu_custom_call.1} parent=1 // pred_check
      _
    $region35: #{tpu_custom_call.1} parent=1 // pred_check_branch
      %40 = sbr.rel (0) target = $region37
    $region36: #{tpu_custom_call.1} parent=1 // pred_region
      _
    $region37: #{tpu_custom_call.1} parent=1 // pred_fallthru
      _
    // Predicated region
    $region38: #{tpu_custom_call.1} parent=1 // pred_check
      _
    $region39: #{tpu_custom_call.1} parent=1 // pred_check_branch
      %42 = sbr.rel (0) target = $region41
    $region40: #{tpu_custom_call.1} parent=1 // pred_region
      _
    $region41: #{tpu_custom_call.1} parent=1 // pred_fallthru
      _
    // Predicated region
    $region42: #{tpu_custom_call.1} parent=1 // pred_check
      _
    $region43: #{tpu_custom_call.1} parent=1 // pred_check_branch
      %44 = sbr.rel (0) target = $region45
    $region44: #{tpu_custom_call.1} parent=1 // pred_region
      _
    $region45: #{tpu_custom_call.1} parent=1 // pred_fallthru
      _
    // Predicated region
    $region46: #{tpu_custom_call.1} parent=1 // pred_check
      _
    $region47: #{tpu_custom_call.1} parent=1 // pred_check_branch
      %46 = sbr.rel (0) target = $region49
    $region48: #{tpu_custom_call.1} parent=1 // pred_region
      _
    $region49: #{tpu_custom_call.1} parent=1 // pred_fallthru
      _
    // Predicated region
    $region50: #{tpu_custom_call.1} parent=1 // pred_check
      _
    $region51: #{tpu_custom_call.1} parent=1 // pred_check_branch
      %48 = sbr.rel (0) target = $region53
    $region52: #{tpu_custom_call.1} parent=1 // pred_region
      _
    $region53: #{tpu_custom_call.1} parent=1 // pred_fallthru
      _
    // Predicated region
    $region54: #{tpu_custom_call.1} parent=1 // pred_check
      _
    $region55: #{tpu_custom_call.1} parent=1 // pred_check_branch
      %50 = sbr.rel (0) target = $region57
    $region56: #{tpu_custom_call.1} parent=1 // pred_region
      _
    $region57: #{tpu_custom_call.1} parent=1 // pred_fallthru
      _
    // Predicated region
    $region58: #{tpu_custom_call.1} parent=1 // pred_check
      _
    $region59: #{tpu_custom_call.1} parent=1 // pred_check_branch
      %52 = sbr.rel (0) target = $region61
    $region60: #{tpu_custom_call.1} parent=1 // pred_region
      _
    $region61: #{tpu_custom_call.1} parent=1 // pred_fallthru
      _
    // Predicated region
    $region62: #{tpu_custom_call.1} parent=1 // pred_check
      _
    $region63: #{tpu_custom_call.1} parent=1 // pred_check_branch
      %54 = sbr.rel (0) target = $region65
    $region64: #{tpu_custom_call.1} parent=1 // pred_region
      _
    $region65: #{tpu_custom_call.1} parent=1 // pred_fallthru
      _
    // Predicated region
    $region66: #{tpu_custom_call.1} parent=1 // pred_check
      _
    $region67: #{tpu_custom_call.1} parent=1 // pred_check_branch
      %56 = sbr.rel (0) target = $region69
    $region68: #{tpu_custom_call.1} parent=1 // pred_region
      _
    $region69: #{tpu_custom_call.1} parent=1 // pred_fallthru
      _
    %v58 = vld [vmem:[%s0] sm:$0xf]
    %v59 = vld [vmem:[%s0 + $0x4] sm:$0xf]
    %v60 = vld [vmem:[%s1] sm:$0xff]
    %v61 = vld [vmem:[%s1 + $0x8] sm:$0xff]
    %v62 = vld [vmem:[%s2] sm:$0x3]
    %v64 = vperm.slane %v62, 0
    %v65 = vperm.slane %v62, 1
    %v70 = vunpack.c.l.b16 %v58
    %v71 = vunpack.c.l.b16 %v59
    %v72 = vpack.c.b16 %v71, %v70
    %v75 = vunpack.c.l.b16 %v60
    %v76 = vunpack.c.h.b16 %v60
    %v77 = vunpack.c.l.b16 %v61
    %v78 = vunpack.c.h.b16 %v61
    %v79 = vpack.c.b16 %v77, %v75
    %v80 = vpack.c.b16 %v78, %v76
    %vm83 = vcmask 130048
    %v85 = vsel %vm83, %v72, 0
    %87 = vmatpush.bf16.msra.mxu0 0
    %88 = vmatpush.bf16.msra.mxu0 0
    %89 = vmatpush.bf16.msra.mxu0 0
    %90 = vmatpush.bf16.msra.mxu0 0
    %91 = vmatpush.bf16.msra.mxu0 0
    %92 = vmatpush.bf16.msra.mxu0 0
    %93 = vmatpush.bf16.msra.mxu0 0
    %94 = vmatpush.bf16.msra.mxu0 %v79
    %95 = vmatmul.bf16.gmra.mxu0 %v85
    %v96 = vpop.f32.mrf.mxu0
    %v97 = vadd.f32 %v64, %v96
    %v98 = vpop.f32.mrf.mxu0
    %v99 = vadd.f32 %v64, %v98
    %100 = vdwg.mxu0
    %101 = vmatpush.bf16.msra.mxu0 0
    %102 = vmatpush.bf16.msra.mxu0 0
    %103 = vmatpush.bf16.msra.mxu0 0
    %104 = vmatpush.bf16.msra.mxu0 0
    %105 = vmatpush.bf16.msra.mxu0 0
    %106 = vmatpush.bf16.msra.mxu0 0
    %107 = vmatpush.bf16.msra.mxu0 0
    %108 = vmatpush.bf16.msra.mxu0 %v80
    %109 = vmatmul.bf16.gmra.mxu0 %v85
    %v110 = vpop.f32.mrf.mxu0
    %v111 = vadd.f32 %v65, %v110
    %v112 = vpop.f32.mrf.mxu0
    %v113 = vadd.f32 %v65, %v112
    %114 = vdwg.mxu0
    %v115 = vld [vmem:[%s3] sm:$0x1]
    %v117 = vperm.slane %v115, 0
    %v119 = vmul.f32 %v97, %v117
    %v120 = vmul.f32 %v99, %v117
    %v121 = vld [vmem:[%s4] sm:$0x1]
    %v123 = vperm.slane %v121, 0
    %v125 = vadd.f32 %v119, %v123
    %v126 = vadd.f32 %v120, %v123
    %v127 = vmax.f32 %v125, 0.0
    %v128 = vmax.f32 %v126, 0.0
    %v129 = vpack.c.bf16 %v128, %v127
    %v130 = vld [vmem:[%s5] sm:$0xf]
    %v131 = vld [vmem:[%s5 + $0x4] sm:$0xf]
    %v132 = vld [vmem:[%s5 + $0x8] sm:$0xf]
    %v133 = vld [vmem:[%s5 + $0xc] sm:$0xf]
    %v134 = vld [vmem:[%s5 + $0x10] sm:$0xf]
    %v135 = vld [vmem:[%s5 + $0x14] sm:$0xf]
    %v136 = vld [vmem:[%s5 + $0x18] sm:$0xf]
    %v137 = vld [vmem:[%s5 + $0x1c] sm:$0xf]
    %v138 = vld [vmem:[%s5 + $0x20] sm:$0xf]
    %v139 = vld [vmem:[%s5 + $0x24] sm:$0xf]
    %v140 = vld [vmem:[%s5 + $0x28] sm:$0xf]
    %v141 = vld [vmem:[%s5 + $0x2c] sm:$0xf]
    %v142 = vld [vmem:[%s5 + $0x30] sm:$0xf]
    %v143 = vld [vmem:[%s5 + $0x34] sm:$0xf]
    %v144 = vld [vmem:[%s5 + $0x38] sm:$0xf]
    %v145 = vld [vmem:[%s5 + $0x3c] sm:$0xf]
    %v146 = vld [vmem:[%s6] sm:$0x1]
    %v148 = vperm.slane %v146, 0
    %v166 = vunpack.c.l.b16 %v130
    %v167 = vunpack.c.l.b16 %v131
    %v168 = vunpack.c.l.b16 %v132
    %v169 = vunpack.c.l.b16 %v133
    %v170 = vunpack.c.l.b16 %v134
    %v171 = vunpack.c.l.b16 %v135
    %v172 = vunpack.c.l.b16 %v136
    %v173 = vunpack.c.l.b16 %v137
    %v174 = vunpack.c.l.b16 %v138
    %v175 = vunpack.c.l.b16 %v139
    %v176 = vunpack.c.l.b16 %v140
    %v177 = vunpack.c.l.b16 %v141
    %v178 = vunpack.c.l.b16 %v142
    %v179 = vunpack.c.l.b16 %v143
    %v180 = vunpack.c.l.b16 %v144
    %v181 = vunpack.c.l.b16 %v145
    %v182 = vpack.c.b16 %v167, %v166
    %v183 = vpack.c.b16 %v169, %v168
    %v184 = vpack.c.b16 %v171, %v170
    %v185 = vpack.c.b16 %v173, %v172
    %v186 = vpack.c.b16 %v175, %v174
    %v187 = vpack.c.b16 %v177, %v176
    %v188 = vpack.c.b16 %v179, %v178
    %v189 = vpack.c.b16 %v181, %v180
    %198 = vmatpush.bf16.msra.mxu0 %v189
    %199 = vmatpush.bf16.msra.mxu0 %v188
    %200 = vmatpush.bf16.msra.mxu0 %v187
    %201 = vmatpush.bf16.msra.mxu0 %v186
    %202 = vmatpush.bf16.msra.mxu0 %v185
    %203 = vmatpush.bf16.msra.mxu0 %v184
    %204 = vmatpush.bf16.msra.mxu0 %v183
    %205 = vmatpush.bf16.msra.mxu0 %v182
    %206 = vmatmul.bf16.gmra.mxu0 %v129
    %v207 = vpop.f32.mrf.mxu0
    %v208 = vadd.f32 %v148, %v207
    %v209 = vpop.f32.mrf.mxu0
    %v210 = vadd.f32 %v148, %v209
    %211 = vdwg.mxu0
    %v212 = vld [vmem:[%s7] sm:$0x1]
    %v214 = vperm.slane %v212, 0
    %v216 = vmul.f32 %v208, %v214
    %v217 = vmul.f32 %v210, %v214
    %v218 = vld [vmem:[%s8] sm:$0x1]
    %v220 = vperm.slane %v218, 0
    %v222 = vadd.f32 %v216, %v220
    %v223 = vadd.f32 %v217, %v220
    %v224 = vmax.f32 %v222, 0.0
    %v225 = vmax.f32 %v223, 0.0
    %vm226 = vcmask 64512
    %v227 = vsel %vm226, %v111, -inf
    %228 = vmax.xlane.f32.xlu0 %v227
    %v229 = vpop.xlane.xlu0 %228
    %v230 = vsel %vm226, %v113, -inf
    %231 = vmax.xlane.f32.xlu0 %v230
    %v232 = vpop.xlane.xlu0 %231
    %v233 = vsub.f32 %v111, %v229
    %v234 = vsub.f32 %v113, %v232
    %v235 = vmul.f32 %v233, 1.442695
    %v236 = vpow.pop %v235
    %v237 = vmul.f32 %v234, 1.442695
    %v238 = vpow.pop %v237
    %v239 = vld [vmem:[%s9] sm:$0xff]
    %v241 = vsel %vm226, %v236, 0
    %v244 = vsel %vm226, %v238, 0
    %246 = vmatpush.msra.mxu0 0.0
    %247 = vmatpush.msra.mxu0 0.0
    %248 = vmatpush.msra.mxu0 0.0
    %249 = vmatpush.msra.mxu0 0.0
    %250 = vmatpush.msra.mxu0 0.0
    %251 = vmatpush.msra.mxu0 0.0
    %252 = vmatpush.msra.mxu0 0.0
    %253 = vmatpush.msra.mxu0 0.0
    %254 = vmatpush.msra.mxu0 0.0
    %255 = vmatpush.msra.mxu0 0.0
    %256 = vmatpush.msra.mxu0 0.0
    %257 = vmatpush.msra.mxu0 0.0
    %258 = vmatpush.msra.mxu0 0.0
    %259 = vmatpush.msra.mxu0 0.0
    %260 = vmatpush.msra.mxu0 0.0
    %261 = vmatpush.msra.mxu0 %v239
    %262 = vmatmul.f32.gmra.mxu0 %v241
    %v263 = vpop.f32.mrf.mxu0
    %v264 = vadd.f32 0.0, %v263
    %265 = vmatmul.f32.gmra.mxu0 %v244
    %v266 = vpop.f32.mrf.mxu0
    %v267 = vadd.f32 0.0, %v266
    %268 = vdwg.mxu0
    %v269 = vrcp.pop %v264
    %v270 = vrcp.pop %v267
    %v271 = vmul.f32 %v236, %v269
    %v272 = vmul.f32 %v238, %v270
    %v273 = vpack.c.bf16 %v272, %v271
    %v274 = vld [vmem:[%s10] sm:$0xff]
    %v276 = vunpack.c.l.b16 %v274
    %v277 = vunpack.c.h.b16 %v274
    %v278 = vpack.c.b16 %v276, %v276
    %v279 = vpack.c.b16 %v277, %v277
    %v281 = vsel %vm226, %v273, 0
    %vm283 = vcmask 1043456
    %v285 = vsel %vm283, %v278, 0
    %v288 = vsel %vm283, %v279, 0
    %290 = vmatpush.bf16.msra.mxu0 0
    %291 = vmatpush.bf16.msra.mxu0 0
    %292 = vmatpush.bf16.msra.mxu0 0
    %293 = vmatpush.bf16.msra.mxu0 0
    %294 = vmatpush.bf16.msra.mxu0 0
    %295 = vmatpush.bf16.msra.mxu0 0
    %296 = vmatpush.bf16.msra.mxu0 0
    %297 = vmatpush.bf16.msra.mxu0 %v285
    %298 = vmatmul.bf16.gmra.mxu0 %v281
    %v299 = vpop.f32.mrf.mxu0
    %v300 = vadd.f32 0.0, %v299
    %v301 = vpop.f32.mrf.mxu0
    %v302 = vadd.f32 0.0, %v301
    %303 = vdwg.mxu0
    %304 = vmatpush.bf16.msra.mxu0 0
    %305 = vmatpush.bf16.msra.mxu0 0
    %306 = vmatpush.bf16.msra.mxu0 0
    %307 = vmatpush.bf16.msra.mxu0 0
    %308 = vmatpush.bf16.msra.mxu0 0
    %309 = vmatpush.bf16.msra.mxu0 0
    %310 = vmatpush.bf16.msra.mxu0 0
    %311 = vmatpush.bf16.msra.mxu0 %v288
    %312 = vmatmul.bf16.gmra.mxu0 %v281
    %v313 = vpop.f32.mrf.mxu0
    %v314 = vadd.f32 0.0, %v313
    %v315 = vpop.f32.mrf.mxu0
    %v316 = vadd.f32 0.0, %v315
    %317 = vdwg.mxu0
    %v318 = vld [vmem:[%s11] sm:$0xf]
    %v319 = vld [vmem:[%s11 + $0x4] sm:$0xf]
    %v320 = vld [vmem:[%s11 + $0x8] sm:$0xf]
    %v321 = vld [vmem:[%s11 + $0xc] sm:$0xf]
    %v322 = vld [vmem:[%s11 + $0x10] sm:$0xf]
    %v323 = vld [vmem:[%s11 + $0x14] sm:$0xf]
    %v324 = vld [vmem:[%s11 + $0x18] sm:$0xf]
    %v325 = vld [vmem:[%s11 + $0x1c] sm:$0xf]
    %v326 = vld [vmem:[%s11 + $0x20] sm:$0xf]
    %v327 = vld [vmem:[%s11 + $0x24] sm:$0xf]
    %v328 = vld [vmem:[%s11 + $0x28] sm:$0xf]
    %v329 = vld [vmem:[%s11 + $0x2c] sm:$0xf]
    %v330 = vld [vmem:[%s11 + $0x30] sm:$0xf]
    %v331 = vld [vmem:[%s11 + $0x34] sm:$0xf]
    %v332 = vld [vmem:[%s11 + $0x38] sm:$0xf]
    %v333 = vld [vmem:[%s11 + $0x3c] sm:$0xf]
    %v334 = vld [vmem:[%s11 + $0x40] sm:$0xf]
    %v335 = vld [vmem:[%s11 + $0x44] sm:$0xf]
    %v336 = vld [vmem:[%s11 + $0x48] sm:$0xf]
    %v337 = vld [vmem:[%s11 + $0x4c] sm:$0xf]
    %v338 = vld [vmem:[%s11 + $0x50] sm:$0xf]
    %v339 = vld [vmem:[%s11 + $0x54] sm:$0xf]
    %v340 = vld [vmem:[%s11 + $0x58] sm:$0xf]
    %v341 = vld [vmem:[%s11 + $0x5c] sm:$0xf]
    %v342 = vld [vmem:[%s11 + $0x60] sm:$0xf]
    %v343 = vld [vmem:[%s11 + $0x64] sm:$0xf]
    %v344 = vld [vmem:[%s11 + $0x68] sm:$0xf]
    %v345 = vld [vmem:[%s11 + $0x6c] sm:$0xf]
    %v346 = vld [vmem:[%s11 + $0x70] sm:$0xf]
    %v347 = vld [vmem:[%s11 + $0x74] sm:$0xf]
    %v348 = vld [vmem:[%s11 + $0x78] sm:$0xf]
    %v349 = vld [vmem:[%s11 + $0x7c] sm:$0xf]
    %v350 = vmul.f32 %v300, %v224
    %v351 = vmul.f32 %v302, %v225
    %v352 = vpack.c.bf16 %v351, %v350
    %v353 = vmul.f32 %v314, %v224
    %v354 = vmul.f32 %v316, %v225
    %v355 = vpack.c.bf16 %v354, %v353
    %v372 = vunpack.c.l.b16 %v334
    %v373 = vunpack.c.l.b16 %v335
    %v374 = vunpack.c.l.b16 %v336
    %v375 = vunpack.c.l.b16 %v337
    %v376 = vunpack.c.l.b16 %v338
    %v377 = vunpack.c.l.b16 %v339
    %v378 = vunpack.c.l.b16 %v340
    %v379 = vunpack.c.l.b16 %v341
    %v380 = vunpack.c.l.b16 %v342
    %v381 = vunpack.c.l.b16 %v343
    %v382 = vunpack.c.l.b16 %v344
    %v383 = vunpack.c.l.b16 %v345
    %v384 = vunpack.c.l.b16 %v346
    %v385 = vunpack.c.l.b16 %v347
    %v386 = vunpack.c.l.b16 %v348
    %v387 = vunpack.c.l.b16 %v349
    %v388 = vpack.c.b16 %v373, %v372
    %v389 = vpack.c.b16 %v375, %v374
    %v390 = vpack.c.b16 %v377, %v376
    %v391 = vpack.c.b16 %v379, %v378
    %v392 = vpack.c.b16 %v381, %v380
    %v393 = vpack.c.b16 %v383, %v382
    %v394 = vpack.c.b16 %v385, %v384
    %v395 = vpack.c.b16 %v387, %v386
    %404 = vmatpush.bf16.msra.mxu0 %v395
    %405 = vmatpush.bf16.msra.mxu0 %v394
    %406 = vmatpush.bf16.msra.mxu0 %v393
    %407 = vmatpush.bf16.msra.mxu0 %v392
    %408 = vmatpush.bf16.msra.mxu0 %v391
    %409 = vmatpush.bf16.msra.mxu0 %v390
    %410 = vmatpush.bf16.msra.mxu0 %v389
    %411 = vmatpush.bf16.msra.mxu0 %v388
    %412 = vmatmul.bf16.gmra.mxu0 %v355
    %v413 = vpop.f32.mrf.mxu0
    %v414 = vadd.f32 0.0, %v413
    %v415 = vpop.f32.mrf.mxu0
    %v416 = vadd.f32 0.0, %v415
    %417 = vdwg.mxu0
    %v434 = vunpack.c.l.b16 %v318
    %v435 = vunpack.c.l.b16 %v319
    %v436 = vunpack.c.l.b16 %v320
    %v437 = vunpack.c.l.b16 %v321
    %v438 = vunpack.c.l.b16 %v322
    %v439 = vunpack.c.l.b16 %v323
    %v440 = vunpack.c.l.b16 %v324
    %v441 = vunpack.c.l.b16 %v325
    %v442 = vunpack.c.l.b16 %v326
    %v443 = vunpack.c.l.b16 %v327
    %v444 = vunpack.c.l.b16 %v328
    %v445 = vunpack.c.l.b16 %v329
    %v446 = vunpack.c.l.b16 %v330
    %v447 = vunpack.c.l.b16 %v331
    %v448 = vunpack.c.l.b16 %v332
    %v449 = vunpack.c.l.b16 %v333
    %v450 = vpack.c.b16 %v435, %v434
    %v451 = vpack.c.b16 %v437, %v436
    %v452 = vpack.c.b16 %v439, %v438
    %v453 = vpack.c.b16 %v441, %v440
    %v454 = vpack.c.b16 %v443, %v442
    %v455 = vpack.c.b16 %v445, %v444
    %v456 = vpack.c.b16 %v447, %v446
    %v457 = vpack.c.b16 %v449, %v448
    %466 = vmatpush.bf16.msra.mxu0 %v457
    %467 = vmatpush.bf16.msra.mxu0 %v456
    %468 = vmatpush.bf16.msra.mxu0 %v455
    %469 = vmatpush.bf16.msra.mxu0 %v454
    %470 = vmatpush.bf16.msra.mxu0 %v453
    %471 = vmatpush.bf16.msra.mxu0 %v452
    %472 = vmatpush.bf16.msra.mxu0 %v451
    %473 = vmatpush.bf16.msra.mxu0 %v450
    %474 = vmatmul.bf16.gmra.mxu0 %v352
    %v475 = vpop.f32.mrf.mxu0
    %v476 = vadd.f32 %v414, %v475
    %v477 = vpop.f32.mrf.mxu0
    %v478 = vadd.f32 %v416, %v477
    %479 = vdwg.mxu0
    %v480 = vld [vmem:[%s12] sm:$0x1]
    %v482 = vperm.slane %v480, 0
    %v484 = vadd.f32 %v476, %v482
    %v485 = vadd.f32 %v478, %v482
    %v486 = vld [vmem:[%s13] sm:$0x1]
    %v488 = vperm.slane %v486, 0
    %v490 = vmul.f32 %v484, %v488
    %v491 = vmul.f32 %v485, %v488
    %v492 = vld [vmem:[%s14] sm:$0x1]
    %v494 = vperm.slane %v492, 0
    %v496 = vadd.f32 %v490, %v494
    %v497 = vadd.f32 %v491, %v494
    %v498 = vmax.f32 %v496, 0.0
    %v499 = vmax.f32 %v497, 0.0
    %v500 = vpack.c.bf16 %v499, %v498
    %v501 = vld [vmem:[%s15] sm:$0xf]
    %v502 = vld [vmem:[%s15 + $0x4] sm:$0xf]
    %v503 = vld [vmem:[%s15 + $0x8] sm:$0xf]
    %v504 = vld [vmem:[%s15 + $0xc] sm:$0xf]
    %v505 = vld [vmem:[%s16] sm:$0x1]
    %v507 = vperm.slane %v505, 0
    %v513 = vunpack.c.l.b16 %v501
    %v514 = vunpack.c.l.b16 %v502
    %v515 = vunpack.c.l.b16 %v503
    %v516 = vunpack.c.l.b16 %v504
    %v517 = vpack.c.b16 %v514, %v513
    %v518 = vpack.c.b16 %v516, %v515
    %vm521 = vcmask 261120
    %v523 = vsel %vm521, %v500, 0
    %525 = vmatpush.bf16.msra.mxu0 0
    %526 = vmatpush.bf16.msra.mxu0 0
    %527 = vmatpush.bf16.msra.mxu0 0
    %528 = vmatpush.bf16.msra.mxu0 0
    %529 = vmatpush.bf16.msra.mxu0 0
    %530 = vmatpush.bf16.msra.mxu0 0
    %531 = vmatpush.bf16.msra.mxu0 %v518
    %532 = vmatpush.bf16.msra.mxu0 %v517
    %533 = vmatmul.bf16.gmra.mxu0 %v523
    %v534 = vpop.f32.mrf.mxu0
    %v535 = vadd.f32 %v507, %v534
    %v536 = vpop.f32.mrf.mxu0
    %v537 = vadd.f32 %v507, %v536
    %538 = vdwg.mxu0
    %v539 = vsub.f32 0.0, %v535
    %v540 = vsub.f32 0.0, %v537
    %v541 = vmul.f32 %v539, 1.442695
    %v542 = vpow.pop %v541
    %v543 = vmul.f32 %v540, 1.442695
    %v544 = vpow.pop %v543
    %v545 = vadd.f32 %v542, 1.0
    %v546 = vadd.f32 %v544, 1.0
    %v547 = vrcp.pop %v545
    %v548 = vmul.f32 %v545, %v547
    %v549 = vsub.f32 1.0, %v548
    %v550 = vmul.f32 %v547, %v549
    %v551 = vadd.f32 %v547, %v550
    %vm552 = vweird.f32 %v545
    %vm553 = vweird.f32 %v547
    %vm554 = vmor %vm552, %vm553
    %v555 = vsel %vm554, %v547, %v551
    %v556 = vand.u32 2147483647, %v545
    %vm557 = vcmp.eq.f32.partialorder %v556, 8.507059e+37
    %v558 = vand.u32 %v545, 2147483648
    %v559 = vor.u32 1.1754944e-38, %v558
    %v560 = vsel %vm557, %v559, %v555
    %v561 = vmul.f32 1.0, %v560
    %v562 = vrcp.pop %v546
    %v563 = vmul.f32 %v546, %v562
    %v564 = vsub.f32 1.0, %v563
    %v565 = vmul.f32 %v562, %v564
    %v566 = vadd.f32 %v562, %v565
    %vm567 = vweird.f32 %v546
    %vm568 = vweird.f32 %v562
    %vm569 = vmor %vm567, %vm568
    %v570 = vsel %vm569, %v562, %v566
    %v571 = vand.u32 2147483647, %v546
    %vm572 = vcmp.eq.f32.partialorder %v571, 8.507059e+37
    %v573 = vand.u32 %v546, 2147483648
    %v574 = vor.u32 1.1754944e-38, %v573
    %v575 = vsel %vm572, %v574, %v570
    %v576 = vmul.f32 1.0, %v575
    %577 = vst [vmem:[#allocation2] sm:$0xff] %v561
    %578 = vst [vmem:[#allocation2 + $0x8] sm:$0xff] %v576
    // Predicated region
    $region70: #{tpu_custom_call.1} parent=1 // pred_check
      _
    $region71: #{tpu_custom_call.1} parent=1 // pred_check_branch
      %580 = sbr.rel (0) target = $region73
    $region72: #{tpu_custom_call.1} parent=1 // pred_region
      %582 = vsyncadd [#allocation3], 0
      %s583 = sshll.u32 [#allocation2], 4
      %s584 = int_to_ptr.vmem [resolvable:$true] %s583
      %s585 = sshll.u32 %s17, 4
      %s586 = int_to_ptr.hbm [resolvable:$true] %s585
      %591 = dma.vmem_to_hbm [thread:$0]  %s584, 256, %s586, [#allocation3], 128, 128, 8
    $region73: #{tpu_custom_call.1} parent=1 // pred_fallthru
      _
    // Predicated region
    $region74: #{tpu_custom_call.1} parent=1 // pred_check
      _
    $region75: #{tpu_custom_call.1} parent=1 // pred_check_branch
      %593 = sbr.rel (0) target = $region77
    $region76: #{tpu_custom_call.1} parent=1 // pred_region
      %595 = dma.done [#allocation3], 256
    $region77: #{tpu_custom_call.1} parent=1 // pred_fallthru
      _
    %596 = vsyncpa [#allocation3], 1

</llo_original>
